<compile_context>
chip_gen: v7x
topology: tpu7x:2x2x1
jax: 0.10.0
libtpu: 0.0.40
codegen_flags: <defaults>
</compile_context>

<pallas_src>
import functools

import jax
import jax.numpy as jnp
import numpy as np
from jax.experimental import pallas as pl
from jax.experimental.pallas import tpu as pltpu


def _round_up(x, m):
    return ((x + m - 1) // m) * m


def _cdiv(a, b):
    return -(-a // b)


# ----------------------------------------------------------------------------
# Fused MLP kernel: one batch tile through all `depth` layers.
#   refs = (x_ref, w_0..w_{depth-1}, b_0..b_{depth-1}, o_ref)
#     x_ref : (TM, IN)           bf16   (IN = real input size, not lane-padded)
#     w_l   : (K_l, N_l_pad)     bf16   (PyTorch weight transposed; K_0 = IN,
#                                        later K padded to 128; N padded to 128)
#     b_l   : (1, N_l_pad)       f32    (zero-padded)
#     o_ref : (TM, OUT_pad)      f32
# ----------------------------------------------------------------------------
def _fc_mlp_kernel(*refs, depth):
    x_ref = refs[0]
    w_refs = refs[1:1 + depth]
    b_refs = refs[1 + depth:1 + 2 * depth]
    o_ref = refs[1 + 2 * depth]

    h = x_ref[...]                                        # bf16 activations
    # Static unroll: depth is small and layer shapes are non-uniform.
    for l in range(depth):
        y = jnp.dot(h, w_refs[l][...],
                    preferred_element_type=jnp.float32)   # MXU bf16 -> f32 acc
        y = y + b_refs[l][...]                            # bias add in f32
        if l < depth - 1:
            y = jnp.maximum(y, 0.0)                       # act == ReLU
            h = y.astype(jnp.bfloat16)                    # quantize for next MXU
        else:
            h = y                                         # final layer stays f32
    o_ref[...] = h                                        # lane-dense (128) store


# ----------------------------------------------------------------------------
# Parameters (deterministic, PyTorch-Linear-style init). Stored unpadded in
# f32 as (in, out) transposed weight + (out,) bias.
# ----------------------------------------------------------------------------
def init_fc_params(key, width, depth, input_size, output_size):
    sizes = [input_size] + [width] * (depth - 1) + [output_size]
    params = []
    for i in range(len(sizes) - 1):
        fan_in, fan_out = sizes[i], sizes[i + 1]
        key, kw, kb = jax.random.split(key, 3)
        bound = 1.0 / np.sqrt(fan_in)
        w_t = jax.random.uniform(kw, (fan_in, fan_out), jnp.float32, -bound, bound)
        b = jax.random.uniform(kb, (fan_out,), jnp.float32, -bound, bound)
        params.append((w_t, b))
    return params


def _pad_params(params):
    """Weights -> bf16, output lanes padded to 128.

    Layer 0's K dim is left at the real input size (matches the un-padded x
    lanes); later layers' K is padded to 128 to match the previous layer's
    padded output lanes.  Padded entries are zero, so they contribute nothing.
    """
    padded_w, padded_b = [], []
    for idx, (w_t, b) in enumerate(params):
        fin, fout = w_t.shape
        fin_p = fin if idx == 0 else _round_up(fin, 128)
        fout_p = _round_up(fout, 128)
        w_p = jnp.zeros((fin_p, fout_p), jnp.bfloat16)
        w_p = w_p.at[:fin, :fout].set(w_t.astype(jnp.bfloat16))
        b_p = jnp.zeros((1, fout_p), jnp.float32).at[0, :fout].set(b)
        padded_w.append(w_p)
        padded_b.append(b_p)
    return padded_w, padded_b


# ----------------------------------------------------------------------------
# FCNetwork forward
# ----------------------------------------------------------------------------
def fc_network_forward(x, params, output_dimensions, *, batch_tile=512):
    """x: (N, C, H, W) -> (N, *output_dimensions)."""
    n = x.shape[0]
    # Stream activations as bf16 (kernel quantizes to bf16 before each MXU
    # matmul anyway); this halves the dominant HBM traffic.
    x2d = x.reshape(n, -1).astype(jnp.bfloat16)          # x.view(-1, input_size)
    in_size = x2d.shape[1]
    out_size = int(np.prod(output_dimensions))
    depth = len(params)

    padded_w, padded_b = _pad_params(params)
    out_pad = padded_w[-1].shape[1]

    # Batch tiling: pick the number of tiles g to minimize pad waste
    # (waste <= ~16*g rows) and use >= 2 tiles when the batch allows so the
    # "parallel" grid axis actually splits across v7x's two TensorCores.
    g = max(1, _cdiv(n, batch_tile))
    if g == 1 and n > 16:
        g = 2
    tm = _round_up(_cdiv(n, g), 16)                      # bf16 sublane tile = (16, 128)
    n_pad = g * tm

    if n_pad != n:
        x_p = jnp.zeros((n_pad, in_size), jnp.bfloat16).at[:n].set(x2d)
    else:
        x_p = x2d

    # Input feature dim is NOT padded: block last dim == full array dim (legal).
    in_specs = [pl.BlockSpec((tm, in_size), lambda i: (i, 0))]
    # Weights/biases: constant block index -> VMEM-resident across batch tiles.
    in_specs += [pl.BlockSpec(w.shape, lambda i: (0, 0)) for w in padded_w]
    in_specs += [pl.BlockSpec(b.shape, lambda i: (0, 0)) for b in padded_b]

    kernel = functools.partial(_fc_mlp_kernel, depth=depth)
    out_p = pl.pallas_call(
        kernel,
        out_shape=jax.ShapeDtypeStruct((n_pad, out_pad), jnp.float32),
        grid=(g,),
        in_specs=in_specs,
        out_specs=pl.BlockSpec((tm, out_pad), lambda i: (i, 0)),
        compiler_params=pltpu.CompilerParams(
            dimension_semantics=("parallel",),           # shard batch over TCs (v7x)
        ),
    )(x_p, *padded_w, *padded_b)

    return out_p[:n, :out_size].reshape(-1, *output_dimensions)


if __name__ == "__main__":
    # Small shapes consistent with the module defaults (width scaled down).
    batch = 2
    input_dimensions = (1, 28, 28)          # -> input_size = 784
    output_dimensions = (10,)
    width = 32
    depth = 5

    input_size = int(np.prod(input_dimensions))
    output_size = int(np.prod(output_dimensions))

    key = jax.random.PRNGKey(0)
    key, kx = jax.random.split(key)
    x = jax.random.normal(kx, (batch,) + input_dimensions, jnp.float32)

    params = init_fc_params(key, width, depth, input_size, output_size)

    out = fc_network_forward(x, params, output_dimensions)
    out = jax.block_until_ready(out)

    # Pure-JAX reference with the same numerics (bf16 inputs/weights, f32 acc).
    h = x.reshape(batch, -1).astype(jnp.bfloat16)
    for w_t, b in params[:-1]:
        y = jnp.dot(h, w_t.astype(jnp.bfloat16),
                    preferred_element_type=jnp.float32) + b
        h = jnp.maximum(y, 0.0).astype(jnp.bfloat16)
    w_t, b = params[-1]
    ref = (jnp.dot(h, w_t.astype(jnp.bfloat16),
                   preferred_element_type=jnp.float32) + b)
    ref = ref.reshape(-1, *output_dimensions)

    np.testing.assert_allclose(np.asarray(out), np.asarray(ref), rtol=5e-3, atol=5e-3)
    assert out.shape == (batch,) + output_dimensions
    print("KERNEL_OK")
</pallas_src>

<mosaic_0001>
module attributes {stable_mosaic.version = 11 : i64} {
  func.func @_fc_mlp_kernel(%arg0: i32, %arg1: memref<16x784xbf16, #tpu.memory_space<vmem>>, %arg2: memref<784x128xbf16, #tpu.memory_space<vmem>>, %arg3: memref<128x128xbf16, #tpu.memory_space<vmem>>, %arg4: memref<128x128xbf16, #tpu.memory_space<vmem>>, %arg5: memref<128x128xbf16, #tpu.memory_space<vmem>>, %arg6: memref<128x128xbf16, #tpu.memory_space<vmem>>, %arg7: memref<1x128xf32, #tpu.memory_space<vmem>>, %arg8: memref<1x128xf32, #tpu.memory_space<vmem>>, %arg9: memref<1x128xf32, #tpu.memory_space<vmem>>, %arg10: memref<1x128xf32, #tpu.memory_space<vmem>>, %arg11: memref<1x128xf32, #tpu.memory_space<vmem>>, %arg12: memref<16x128xf32, #tpu.memory_space<vmem>>) attributes {dimension_semantics = [#tpu.dimension_semantics<parallel>], iteration_bounds = array<i64: 1>, scalar_prefetch = 0 : i64, scratch_operands = 0 : i64, tpu.core_type = #tpu.core_type<tc>, window_params = [{transform_indices = @transform_0, window_bounds = array<i64: 16, 784>}, {pipeline_mode = #tpu.pipeline_mode<synchronous>, transform_indices = @transform_1, window_bounds = array<i64: 784, 128>}, {pipeline_mode = #tpu.pipeline_mode<synchronous>, transform_indices = @transform_2, window_bounds = array<i64: 128, 128>}, {pipeline_mode = #tpu.pipeline_mode<synchronous>, transform_indices = @transform_3, window_bounds = array<i64: 128, 128>}, {pipeline_mode = #tpu.pipeline_mode<synchronous>, transform_indices = @transform_4, window_bounds = array<i64: 128, 128>}, {pipeline_mode = #tpu.pipeline_mode<synchronous>, transform_indices = @transform_5, window_bounds = array<i64: 128, 128>}, {pipeline_mode = #tpu.pipeline_mode<synchronous>, transform_indices = @transform_6, window_bounds = array<i64: 1, 128>}, {pipeline_mode = #tpu.pipeline_mode<synchronous>, transform_indices = @transform_7, window_bounds = array<i64: 1, 128>}, {pipeline_mode = #tpu.pipeline_mode<synchronous>, transform_indices = @transform_8, window_bounds = array<i64: 1, 128>}, {pipeline_mode = #tpu.pipeline_mode<synchronous>, transform_indices = @transform_9, window_bounds = array<i64: 1, 128>}, {pipeline_mode = #tpu.pipeline_mode<synchronous>, transform_indices = @transform_10, window_bounds = array<i64: 1, 128>}, {transform_indices = @transform_11, window_bounds = array<i64: 16, 128>}]} {
    %c0 = arith.constant 0 : index
    %c0_0 = arith.constant 0 : index
    %0 = vector.load %arg1[%c0, %c0_0] : memref<16x784xbf16, #tpu.memory_space<vmem>>, vector<16x784xbf16>
    %c0_1 = arith.constant 0 : index
    %c0_2 = arith.constant 0 : index
    %1 = vector.load %arg2[%c0_1, %c0_2] : memref<784x128xbf16, #tpu.memory_space<vmem>>, vector<784x128xbf16>
    %cst = arith.constant dense<0.000000e+00> : vector<16x128xf32>
    %2 = tpu.matmul %0, %1, %cst {dimension_numbers = #tpu.dot_dimension_numbers<[1], [0], [0], [1], [0, 0, 1, 1], [], []>} : vector<16x784xbf16>, vector<784x128xbf16>, vector<16x128xf32> -> vector<16x128xf32>
    %c0_3 = arith.constant 0 : index
    %c0_4 = arith.constant 0 : index
    %3 = vector.load %arg7[%c0_3, %c0_4] : memref<1x128xf32, #tpu.memory_space<vmem>>, vector<1x128xf32>
    %4 = vector.broadcast %3 : vector<1x128xf32> to vector<16x128xf32>
    %5 = arith.addf %2, %4 : vector<16x128xf32>
    %cst_5 = arith.constant 0.000000e+00 : f32
    %6 = vector.broadcast %cst_5 : f32 to vector<16x128xf32>
    %7 = arith.maximumf %5, %6 : vector<16x128xf32>
    %8 = arith.truncf %7 : vector<16x128xf32> to vector<16x128xbf16>
    %c0_6 = arith.constant 0 : index
    %c0_7 = arith.constant 0 : index
    %9 = vector.load %arg3[%c0_6, %c0_7] : memref<128x128xbf16, #tpu.memory_space<vmem>>, vector<128x128xbf16>
    %cst_8 = arith.constant dense<0.000000e+00> : vector<16x128xf32>
    %10 = tpu.matmul %8, %9, %cst_8 {dimension_numbers = #tpu.dot_dimension_numbers<[1], [0], [0], [1], [0, 0, 1, 1], [], []>} : vector<16x128xbf16>, vector<128x128xbf16>, vector<16x128xf32> -> vector<16x128xf32>
    %c0_9 = arith.constant 0 : index
    %c0_10 = arith.constant 0 : index
    %11 = vector.load %arg8[%c0_9, %c0_10] : memref<1x128xf32, #tpu.memory_space<vmem>>, vector<1x128xf32>
    %12 = vector.broadcast %11 : vector<1x128xf32> to vector<16x128xf32>
    %13 = arith.addf %10, %12 : vector<16x128xf32>
    %cst_11 = arith.constant 0.000000e+00 : f32
    %14 = vector.broadcast %cst_11 : f32 to vector<16x128xf32>
    %15 = arith.maximumf %13, %14 : vector<16x128xf32>
    %16 = arith.truncf %15 : vector<16x128xf32> to vector<16x128xbf16>
    %c0_12 = arith.constant 0 : index
    %c0_13 = arith.constant 0 : index
    %17 = vector.load %arg4[%c0_12, %c0_13] : memref<128x128xbf16, #tpu.memory_space<vmem>>, vector<128x128xbf16>
    %cst_14 = arith.constant dense<0.000000e+00> : vector<16x128xf32>
    %18 = tpu.matmul %16, %17, %cst_14 {dimension_numbers = #tpu.dot_dimension_numbers<[1], [0], [0], [1], [0, 0, 1, 1], [], []>} : vector<16x128xbf16>, vector<128x128xbf16>, vector<16x128xf32> -> vector<16x128xf32>
    %c0_15 = arith.constant 0 : index
    %c0_16 = arith.constant 0 : index
    %19 = vector.load %arg9[%c0_15, %c0_16] : memref<1x128xf32, #tpu.memory_space<vmem>>, vector<1x128xf32>
    %20 = vector.broadcast %19 : vector<1x128xf32> to vector<16x128xf32>
    %21 = arith.addf %18, %20 : vector<16x128xf32>
    %cst_17 = arith.constant 0.000000e+00 : f32
    %22 = vector.broadcast %cst_17 : f32 to vector<16x128xf32>
    %23 = arith.maximumf %21, %22 : vector<16x128xf32>
    %24 = arith.truncf %23 : vector<16x128xf32> to vector<16x128xbf16>
    %c0_18 = arith.constant 0 : index
    %c0_19 = arith.constant 0 : index
    %25 = vector.load %arg5[%c0_18, %c0_19] : memref<128x128xbf16, #tpu.memory_space<vmem>>, vector<128x128xbf16>
    %cst_20 = arith.constant dense<0.000000e+00> : vector<16x128xf32>
    %26 = tpu.matmul %24, %25, %cst_20 {dimension_numbers = #tpu.dot_dimension_numbers<[1], [0], [0], [1], [0, 0, 1, 1], [], []>} : vector<16x128xbf16>, vector<128x128xbf16>, vector<16x128xf32> -> vector<16x128xf32>
    %c0_21 = arith.constant 0 : index
    %c0_22 = arith.constant 0 : index
    %27 = vector.load %arg10[%c0_21, %c0_22] : memref<1x128xf32, #tpu.memory_space<vmem>>, vector<1x128xf32>
    %28 = vector.broadcast %27 : vector<1x128xf32> to vector<16x128xf32>
    %29 = arith.addf %26, %28 : vector<16x128xf32>
    %cst_23 = arith.constant 0.000000e+00 : f32
    %30 = vector.broadcast %cst_23 : f32 to vector<16x128xf32>
    %31 = arith.maximumf %29, %30 : vector<16x128xf32>
    %32 = arith.truncf %31 : vector<16x128xf32> to vector<16x128xbf16>
    %c0_24 = arith.constant 0 : index
    %c0_25 = arith.constant 0 : index
    %33 = vector.load %arg6[%c0_24, %c0_25] : memref<128x128xbf16, #tpu.memory_space<vmem>>, vector<128x128xbf16>
    %cst_26 = arith.constant dense<0.000000e+00> : vector<16x128xf32>
    %34 = tpu.matmul %32, %33, %cst_26 {dimension_numbers = #tpu.dot_dimension_numbers<[1], [0], [0], [1], [0, 0, 1, 1], [], []>} : vector<16x128xbf16>, vector<128x128xbf16>, vector<16x128xf32> -> vector<16x128xf32>
    %c0_27 = arith.constant 0 : index
    %c0_28 = arith.constant 0 : index
    %35 = vector.load %arg11[%c0_27, %c0_28] : memref<1x128xf32, #tpu.memory_space<vmem>>, vector<1x128xf32>
    %36 = vector.broadcast %35 : vector<1x128xf32> to vector<16x128xf32>
    %37 = arith.addf %34, %36 : vector<16x128xf32>
    %c0_29 = arith.constant 0 : index
    %c0_30 = arith.constant 0 : index
    %38 = vector.load %arg12[%c0_29, %c0_30] : memref<16x128xf32, #tpu.memory_space<vmem>>, vector<16x128xf32>
    tpu.vector_store %arg12[%c0_29, %c0_30], %37 {strides = array<i32>} : memref<16x128xf32, #tpu.memory_space<vmem>>, vector<16x128xf32>,
    return
  }
  func.func @transform_0(%arg0: i32) -> (i32, i32) {
    %c0_i32 = arith.constant 0 : i32
    %c0_i32_0 = arith.constant 0 : i32
    return %arg0, %c0_i32 : i32, i32
  }
  func.func @transform_1(%arg0: i32) -> (i32, i32) {
    %c0_i32 = arith.constant 0 : i32
    %c0_i32_0 = arith.constant 0 : i32
    %c0_i32_1 = arith.constant 0 : i32
    return %c0_i32, %c0_i32_0 : i32, i32
  }
  func.func @transform_2(%arg0: i32) -> (i32, i32) {
    %c0_i32 = arith.constant 0 : i32
    %c0_i32_0 = arith.constant 0 : i32
    %c0_i32_1 = arith.constant 0 : i32
    return %c0_i32, %c0_i32_0 : i32, i32
  }
  func.func @transform_3(%arg0: i32) -> (i32, i32) {
    %c0_i32 = arith.constant 0 : i32
    %c0_i32_0 = arith.constant 0 : i32
    %c0_i32_1 = arith.constant 0 : i32
    return %c0_i32, %c0_i32_0 : i32, i32
  }
  func.func @transform_4(%arg0: i32) -> (i32, i32) {
    %c0_i32 = arith.constant 0 : i32
    %c0_i32_0 = arith.constant 0 : i32
    %c0_i32_1 = arith.constant 0 : i32
    return %c0_i32, %c0_i32_0 : i32, i32
  }
  func.func @transform_5(%arg0: i32) -> (i32, i32) {
    %c0_i32 = arith.constant 0 : i32
    %c0_i32_0 = arith.constant 0 : i32
    %c0_i32_1 = arith.constant 0 : i32
    return %c0_i32, %c0_i32_0 : i32, i32
  }
  func.func @transform_6(%arg0: i32) -> (i32, i32) {
    %c0_i32 = arith.constant 0 : i32
    %c0_i32_0 = arith.constant 0 : i32
    %c0_i32_1 = arith.constant 0 : i32
    return %c0_i32, %c0_i32_0 : i32, i32
  }
  func.func @transform_7(%arg0: i32) -> (i32, i32) {
    %c0_i32 = arith.constant 0 : i32
    %c0_i32_0 = arith.constant 0 : i32
    %c0_i32_1 = arith.constant 0 : i32
    return %c0_i32, %c0_i32_0 : i32, i32
  }
  func.func @transform_8(%arg0: i32) -> (i32, i32) {
    %c0_i32 = arith.constant 0 : i32
    %c0_i32_0 = arith.constant 0 : i32
    %c0_i32_1 = arith.constant 0 : i32
    return %c0_i32, %c0_i32_0 : i32, i32
  }
  func.func @transform_9(%arg0: i32) -> (i32, i32) {
    %c0_i32 = arith.constant 0 : i32
    %c0_i32_0 = arith.constant 0 : i32
    %c0_i32_1 = arith.constant 0 : i32
    return %c0_i32, %c0_i32_0 : i32, i32
  }
  func.func @transform_10(%arg0: i32) -> (i32, i32) {
    %c0_i32 = arith.constant 0 : i32
    %c0_i32_0 = arith.constant 0 : i32
    %c0_i32_1 = arith.constant 0 : i32
    return %c0_i32, %c0_i32_0 : i32, i32
  }
  func.func @transform_11(%arg0: i32) -> (i32, i32) {
    %c0_i32 = arith.constant 0 : i32
    %c0_i32_0 = arith.constant 0 : i32
    return %arg0, %c0_i32 : i32, i32
  }
}

</mosaic_0001>

<llo_original>
// kernel: tpu_custom_call.1
$region0: #{tpu_custom_call.1}
  #allocation0 [shape = 'u32[]', space=smem, size = 0x4, offset = 0x4, fixed_abs, tag = 'smem constant byte address 0x4 - core index']
  #allocation1 [shape = 'u32[144,128]{1,0:T(1,128)}', space=vmem, size = 0x12000, scoped, tag = 'internal scratch']
  %s0 = inlined_call_operand.hbm [shape: bf16[16,784], index: 0, kind: input, shape index: {}]
  %s1 = inlined_call_operand.hbm [shape: bf16[784,128], index: 1, kind: input, shape index: {}]
  %s2 = inlined_call_operand.hbm [shape: bf16[128,128], index: 2, kind: input, shape index: {}]
  %s3 = inlined_call_operand.hbm [shape: bf16[128,128], index: 3, kind: input, shape index: {}]
  %s4 = inlined_call_operand.hbm [shape: bf16[128,128], index: 4, kind: input, shape index: {}]
  %s5 = inlined_call_operand.hbm [shape: bf16[128,128], index: 5, kind: input, shape index: {}]
  %s6 = inlined_call_operand.vmem [shape: f32[1,128], index: 6, kind: input, shape index: {}]
  %s7 = inlined_call_operand.vmem [shape: f32[1,128], index: 7, kind: input, shape index: {}]
  %s8 = inlined_call_operand.vmem [shape: f32[1,128], index: 8, kind: input, shape index: {}]
  %s9 = inlined_call_operand.vmem [shape: f32[1,128], index: 9, kind: input, shape index: {}]
  %s10 = inlined_call_operand.vmem [shape: f32[1,128], index: 10, kind: input, shape index: {}]
  %s11 = inlined_call_operand.hbm [shape: f32[16,128], index: 11, kind: output, shape index: {}]
  %s12 = sld [smem:[#allocation0]]
  $region78: #{tpu_custom_call.1} parent=0
    _
  %s14 = ssub.s32 1, %s12
  %s15 = scalar_select 0, %s14, %s12
  $region1: #{tpu_custom_call.1} parent=0
    #allocation2 [shape = 'u8[28672]{0}', space=vmem, size = 0x7000, scoped, tag = 'input window, operand 0, single buffered']
    #allocation3 [shape = 's32[1]{0}', space=sflag, size = 0x4, scoped, tag = 'scoped memory for tpu_custom_call.1']
    #allocation4 [shape = 's32[1]{0}', space=sflag, size = 0x4, scoped, tag = 'scoped memory for tpu_custom_call.1']
    #allocation5 [shape = 'u8[200704]{0}', space=vmem, size = 0x31000, scoped, tag = 'input window, operand 1, single buffered']
    #allocation6 [shape = 's32[1]{0}', space=sflag, size = 0x4, scoped, tag = 'scoped memory for tpu_custom_call.1']
    #allocation7 [shape = 'u8[32768]{0}', space=vmem, size = 0x8000, scoped, tag = 'input window, operand 2, single buffered']
    #allocation8 [shape = 'u8[32768]{0}', space=vmem, size = 0x8000, scoped, tag = 'input window, operand 3, single buffered']
    #allocation9 [shape = 's32[1]{0}', space=sflag, size = 0x4, scoped, tag = 'scoped memory for tpu_custom_call.1']
    #allocation10 [shape = 'u8[32768]{0}', space=vmem, size = 0x8000, scoped, tag = 'input window, operand 4, single buffered']
    #allocation11 [shape = 'u8[32768]{0}', space=vmem, size = 0x8000, scoped, tag = 'input window, operand 5, single buffered']
    #allocation12 [shape = 's32[1]{0}', space=sflag, size = 0x4, scoped, tag = 'scoped memory for tpu_custom_call.1']
    #allocation13 [shape = 'u8[8192]{0}', space=vmem, size = 0x2000, scoped, tag = 'output window, operand 0, single buffered']
    %16 = vsyncpa [#allocation3], 0
    %17 = vsyncpa [#allocation6], 0
    %18 = vsyncpa [#allocation9], 0
    %19 = vsyncpa [#allocation12], 0
    %20 = vsyncpa [#allocation4], 0
    // Predicated region
    $region2: #{tpu_custom_call.1} parent=1 // pred_check
      _
    $region3: #{tpu_custom_call.1} parent=1 // pred_check_branch
      %22 = sbr.rel (0) target = $region5
    $region4: #{tpu_custom_call.1} parent=1 // pred_region
      %s24 = ssub.s32 896, 896
      %25 = vsyncadd [#allocation3], %s24
      %s26 = sshll.u32 [#allocation2], 4
      %s27 = int_to_ptr.vmem [resolvable:$true] %s26
      %32 = dma.hbm_to_vmem [thread:$0]  %s0, 896, %s27, [#allocation3], 448, 448, 28
    $region5: #{tpu_custom_call.1} parent=1 // pred_fallthru
      _
    // Predicated region
    $region6: #{tpu_custom_call.1} parent=1 // pred_check
      _
    $region7: #{tpu_custom_call.1} parent=1 // pred_check_branch
      %34 = sbr.rel (0) target = $region9
    $region8: #{tpu_custom_call.1} parent=1 // pred_region
      %s36 = ssub.s32 6272, 6272
      %37 = vsyncadd [#allocation6], %s36
      %s38 = sshll.u32 [#allocation5], 4
      %s39 = int_to_ptr.vmem [resolvable:$true] %s38
      %44 = dma.hbm_to_vmem [thread:$0]  %s1, 6272, %s39, [#allocation6], 64, 64, 4
    $region9: #{tpu_custom_call.1} parent=1 // pred_fallthru
      _
    // Predicated region
    $region10: #{tpu_custom_call.1} parent=1 // pred_check
      _
    $region11: #{tpu_custom_call.1} parent=1 // pred_check_branch
      %46 = sbr.rel (0) target = $region13
    $region12: #{tpu_custom_call.1} parent=1 // pred_region
      %s48 = ssub.s32 1024, 1024
      %49 = vsyncadd [#allocation6], %s48
      %s50 = sshll.u32 [#allocation7], 4
      %s51 = int_to_ptr.vmem [resolvable:$true] %s50
      %56 = dma.hbm_to_vmem [thread:$0]  %s2, 1024, %s51, [#allocation6], 64, 64, 4
    $region13: #{tpu_custom_call.1} parent=1 // pred_fallthru
      _
    // Predicated region
    $region14: #{tpu_custom_call.1} parent=1 // pred_check
      _
    $region15: #{tpu_custom_call.1} parent=1 // pred_check_branch
      %58 = sbr.rel (0) target = $region17
    $region16: #{tpu_custom_call.1} parent=1 // pred_region
      %s60 = ssub.s32 1024, 1024
      %61 = vsyncadd [#allocation9], %s60
      %s62 = sshll.u32 [#allocation8], 4
      %s63 = int_to_ptr.vmem [resolvable:$true] %s62
      %68 = dma.hbm_to_vmem [thread:$0]  %s3, 1024, %s63, [#allocation9], 64, 64, 4
    $region17: #{tpu_custom_call.1} parent=1 // pred_fallthru
      _
    // Predicated region
    $region18: #{tpu_custom_call.1} parent=1 // pred_check
      _
    $region19: #{tpu_custom_call.1} parent=1 // pred_check_branch
      %70 = sbr.rel (0) target = $region21
    $region20: #{tpu_custom_call.1} parent=1 // pred_region
      %s72 = ssub.s32 1024, 1024
      %73 = vsyncadd [#allocation9], %s72
      %s74 = sshll.u32 [#allocation10], 4
      %s75 = int_to_ptr.vmem [resolvable:$true] %s74
      %80 = dma.hbm_to_vmem [thread:$0]  %s4, 1024, %s75, [#allocation9], 64, 64, 4
    $region21: #{tpu_custom_call.1} parent=1 // pred_fallthru
      _
    // Predicated region
    $region22: #{tpu_custom_call.1} parent=1 // pred_check
      _
    $region23: #{tpu_custom_call.1} parent=1 // pred_check_branch
      %82 = sbr.rel (0) target = $region25
    $region24: #{tpu_custom_call.1} parent=1 // pred_region
      %s84 = ssub.s32 1024, 1024
      %85 = vsyncadd [#allocation12], %s84
      %s86 = sshll.u32 [#allocation11], 4
      %s87 = int_to_ptr.vmem [resolvable:$true] %s86
      %92 = dma.hbm_to_vmem [thread:$0]  %s5, 1024, %s87, [#allocation12], 64, 64, 4
    $region25: #{tpu_custom_call.1} parent=1 // pred_fallthru
      _
    // Predicated region
    $region26: #{tpu_custom_call.1} parent=1 // pred_check
      _
    $region27: #{tpu_custom_call.1} parent=1 // pred_check_branch
      %94 = sbr.rel (0) target = $region29
    $region28: #{tpu_custom_call.1} parent=1 // pred_region
      _
    $region29: #{tpu_custom_call.1} parent=1 // pred_fallthru
      _
    // Predicated region
    $region30: #{tpu_custom_call.1} parent=1 // pred_check
      _
    $region31: #{tpu_custom_call.1} parent=1 // pred_check_branch
      %96 = sbr.rel (0) target = $region33
    $region32: #{tpu_custom_call.1} parent=1 // pred_region
      _
    $region33: #{tpu_custom_call.1} parent=1 // pred_fallthru
      _
    // Predicated region
    $region34: #{tpu_custom_call.1} parent=1 // pred_check
      _
    $region35: #{tpu_custom_call.1} parent=1 // pred_check_branch
      %98 = sbr.rel (0) target = $region37
    $region36: #{tpu_custom_call.1} parent=1 // pred_region
      _
    $region37: #{tpu_custom_call.1} parent=1 // pred_fallthru
      _
    // Predicated region
    $region38: #{tpu_custom_call.1} parent=1 // pred_check
      _
    $region39: #{tpu_custom_call.1} parent=1 // pred_check_branch
      %100 = sbr.rel (0) target = $region41
    $region40: #{tpu_custom_call.1} parent=1 // pred_region
      _
    $region41: #{tpu_custom_call.1} parent=1 // pred_fallthru
      _
    // Predicated region
    $region42: #{tpu_custom_call.1} parent=1 // pred_check
      _
    $region43: #{tpu_custom_call.1} parent=1 // pred_check_branch
      %102 = sbr.rel (0) target = $region45
    $region44: #{tpu_custom_call.1} parent=1 // pred_region
      _
    $region45: #{tpu_custom_call.1} parent=1 // pred_fallthru
      _
    // Predicated region
    $region46: #{tpu_custom_call.1} parent=1 // pred_check
      _
    $region47: #{tpu_custom_call.1} parent=1 // pred_check_branch
      %104 = sbr.rel (0) target = $region49
    $region48: #{tpu_custom_call.1} parent=1 // pred_region
      %105 = dma.done [#allocation3], 896
    $region49: #{tpu_custom_call.1} parent=1 // pred_fallthru
      _
    // Predicated region
    $region50: #{tpu_custom_call.1} parent=1 // pred_check
      _
    $region51: #{tpu_custom_call.1} parent=1 // pred_check_branch
      %107 = sbr.rel (0) target = $region53
    $region52: #{tpu_custom_call.1} parent=1 // pred_region
      %108 = dma.done [#allocation6], 6272
    $region53: #{tpu_custom_call.1} parent=1 // pred_fallthru
      _
    // Predicated region
    $region54: #{tpu_custom_call.1} parent=1 // pred_check
      _
    $region55: #{tpu_custom_call.1} parent=1 // pred_check_branch
      %110 = sbr.rel (0) target = $region57
    $region56: #{tpu_custom_call.1} parent=1 // pred_region
      %111 = dma.done [#allocation6], 1024
    $region57: #{tpu_custom_call.1} parent=1 // pred_fallthru
      _
    // Predicated region
    $region58: #{tpu_custom_call.1} parent=1 // pred_check
      _
    $region59: #{tpu_custom_call.1} parent=1 // pred_check_branch
      %113 = sbr.rel (0) target = $region61
    $region60: #{tpu_custom_call.1} parent=1 // pred_region
      %114 = dma.done [#allocation9], 1024
    $region61: #{tpu_custom_call.1} parent=1 // pred_fallthru
      _
    // Predicated region
    $region62: #{tpu_custom_call.1} parent=1 // pred_check
      _
    $region63: #{tpu_custom_call.1} parent=1 // pred_check_branch
      %116 = sbr.rel (0) target = $region65
    $region64: #{tpu_custom_call.1} parent=1 // pred_region
      %117 = dma.done [#allocation9], 1024
    $region65: #{tpu_custom_call.1} parent=1 // pred_fallthru
      _
    // Predicated region
    $region66: #{tpu_custom_call.1} parent=1 // pred_check
      _
    $region67: #{tpu_custom_call.1} parent=1 // pred_check_branch
      %119 = sbr.rel (0) target = $region69
    $region68: #{tpu_custom_call.1} parent=1 // pred_region
      %120 = dma.done [#allocation12], 1024
    $region69: #{tpu_custom_call.1} parent=1 // pred_fallthru
      _
    %v122 = vld [vmem:[#allocation2] sm:$0xff]
    %v123 = vld [vmem:[#allocation2 + $0x8] sm:$0xff]
    %v124 = vld [vmem:[#allocation2 + $0x10] sm:$0xff]
    %v125 = vld [vmem:[#allocation2 + $0x18] sm:$0xf]
    %v126 = vld [vmem:[#allocation2 + $0x1c] sm:$0xff]
    %v127 = vld [vmem:[#allocation2 + $0x24] sm:$0xff]
    %v128 = vld [vmem:[#allocation2 + $0x2c] sm:$0xff]
    %v129 = vld [vmem:[#allocation2 + $0x34] sm:$0xf]
    %v130 = vld [vmem:[#allocation5] sm:$0xf]
    %v131 = vld [vmem:[#allocation5 + $0x4] sm:$0xf]
    %v132 = vld [vmem:[#allocation5 + $0x8] sm:$0xf]
    %v133 = vld [vmem:[#allocation5 + $0xc] sm:$0xf]
    %v134 = vld [vmem:[#allocation5 + $0x10] sm:$0xf]
    %v135 = vld [vmem:[#allocation5 + $0x14] sm:$0xf]
    %v136 = vld [vmem:[#allocation5 + $0x18] sm:$0xf]
    %v137 = vld [vmem:[#allocation5 + $0x1c] sm:$0xf]
    %v138 = vld [vmem:[#allocation5 + $0x20] sm:$0xf]
    %v139 = vld [vmem:[#allocation5 + $0x24] sm:$0xf]
    %v140 = vld [vmem:[#allocation5 + $0x28] sm:$0xf]
    %v141 = vld [vmem:[#allocation5 + $0x2c] sm:$0xf]
    %v142 = vld [vmem:[#allocation5 + $0x30] sm:$0xf]
    %v143 = vld [vmem:[#allocation5 + $0x34] sm:$0xf]
    %v144 = vld [vmem:[#allocation5 + $0x38] sm:$0xf]
    %v145 = vld [vmem:[#allocation5 + $0x3c] sm:$0xf]
    %v146 = vld [vmem:[#allocation5 + $0x40] sm:$0xf]
    %v147 = vld [vmem:[#allocation5 + $0x44] sm:$0xf]
    %v148 = vld [vmem:[#allocation5 + $0x48] sm:$0xf]
    %v149 = vld [vmem:[#allocation5 + $0x4c] sm:$0xf]
    %v150 = vld [vmem:[#allocation5 + $0x50] sm:$0xf]
    %v151 = vld [vmem:[#allocation5 + $0x54] sm:$0xf]
    %v152 = vld [vmem:[#allocation5 + $0x58] sm:$0xf]
    %v153 = vld [vmem:[#allocation5 + $0x5c] sm:$0xf]
    %v154 = vld [vmem:[#allocation5 + $0x60] sm:$0xf]
    %v155 = vld [vmem:[#allocation5 + $0x64] sm:$0xf]
    %v156 = vld [vmem:[#allocation5 + $0x68] sm:$0xf]
    %v157 = vld [vmem:[#allocation5 + $0x6c] sm:$0xf]
    %v158 = vld [vmem:[#allocation5 + $0x70] sm:$0xf]
    %v159 = vld [vmem:[#allocation5 + $0x74] sm:$0xf]
    %v160 = vld [vmem:[#allocation5 + $0x78] sm:$0xf]
    %v161 = vld [vmem:[#allocation5 + $0x7c] sm:$0xf]
    %v162 = vld [vmem:[#allocation5 + $0x80] sm:$0xf]
    %v163 = vld [vmem:[#allocation5 + $0x84] sm:$0xf]
    %v164 = vld [vmem:[#allocation5 + $0x88] sm:$0xf]
    %v165 = vld [vmem:[#allocation5 + $0x8c] sm:$0xf]
    %v166 = vld [vmem:[#allocation5 + $0x90] sm:$0xf]
    %v167 = vld [vmem:[#allocation5 + $0x94] sm:$0xf]
    %v168 = vld [vmem:[#allocation5 + $0x98] sm:$0xf]
    %v169 = vld [vmem:[#allocation5 + $0x9c] sm:$0xf]
    %v170 = vld [vmem:[#allocation5 + $0xa0] sm:$0xf]
    %v171 = vld [vmem:[#allocation5 + $0xa4] sm:$0xf]
    %v172 = vld [vmem:[#allocation5 + $0xa8] sm:$0xf]
    %v173 = vld [vmem:[#allocation5 + $0xac] sm:$0xf]
    %v174 = vld [vmem:[#allocation5 + $0xb0] sm:$0xf]
    %v175 = vld [vmem:[#allocation5 + $0xb4] sm:$0xf]
    %v176 = vld [vmem:[#allocation5 + $0xb8] sm:$0xf]
    %v177 = vld [vmem:[#allocation5 + $0xbc] sm:$0xf]
    %v178 = vld [vmem:[#allocation5 + $0xc0] sm:$0xf]
    %v179 = vld [vmem:[#allocation5 + $0xc4] sm:$0xf]
    %v180 = vld [vmem:[#allocation5 + $0xc8] sm:$0xf]
    %v181 = vld [vmem:[#allocation5 + $0xcc] sm:$0xf]
    %v182 = vld [vmem:[#allocation5 + $0xd0] sm:$0xf]
    %v183 = vld [vmem:[#allocation5 + $0xd4] sm:$0xf]
    %v184 = vld [vmem:[#allocation5 + $0xd8] sm:$0xf]
    %v185 = vld [vmem:[#allocation5 + $0xdc] sm:$0xf]
    %v186 = vld [vmem:[#allocation5 + $0xe0] sm:$0xf]
    %v187 = vld [vmem:[#allocation5 + $0xe4] sm:$0xf]
    %v188 = vld [vmem:[#allocation5 + $0xe8] sm:$0xf]
    %v189 = vld [vmem:[#allocation5 + $0xec] sm:$0xf]
    %v190 = vld [vmem:[#allocation5 + $0xf0] sm:$0xf]
    %v191 = vld [vmem:[#allocation5 + $0xf4] sm:$0xf]
    %v192 = vld [vmem:[#allocation5 + $0xf8] sm:$0xf]
    %v193 = vld [vmem:[#allocation5 + $0xfc] sm:$0xf]
    %v194 = vld [vmem:[#allocation5 + $0x100] sm:$0xf]
    %v195 = vld [vmem:[#allocation5 + $0x104] sm:$0xf]
    %v196 = vld [vmem:[#allocation5 + $0x108] sm:$0xf]
    %v197 = vld [vmem:[#allocation5 + $0x10c] sm:$0xf]
    %v198 = vld [vmem:[#allocation5 + $0x110] sm:$0xf]
    %v199 = vld [vmem:[#allocation5 + $0x114] sm:$0xf]
    %v200 = vld [vmem:[#allocation5 + $0x118] sm:$0xf]
    %v201 = vld [vmem:[#allocation5 + $0x11c] sm:$0xf]
    %v202 = vld [vmem:[#allocation5 + $0x120] sm:$0xf]
    %v203 = vld [vmem:[#allocation5 + $0x124] sm:$0xf]
    %v204 = vld [vmem:[#allocation5 + $0x128] sm:$0xf]
    %v205 = vld [vmem:[#allocation5 + $0x12c] sm:$0xf]
    %v206 = vld [vmem:[#allocation5 + $0x130] sm:$0xf]
    %v207 = vld [vmem:[#allocation5 + $0x134] sm:$0xf]
    %v208 = vld [vmem:[#allocation5 + $0x138] sm:$0xf]
    %v209 = vld [vmem:[#allocation5 + $0x13c] sm:$0xf]
    %v210 = vld [vmem:[#allocation5 + $0x140] sm:$0xf]
    %v211 = vld [vmem:[#allocation5 + $0x144] sm:$0xf]
    %v212 = vld [vmem:[#allocation5 + $0x148] sm:$0xf]
    %v213 = vld [vmem:[#allocation5 + $0x14c] sm:$0xf]
    %v214 = vld [vmem:[#allocation5 + $0x150] sm:$0xf]
    %v215 = vld [vmem:[#allocation5 + $0x154] sm:$0xf]
    %v216 = vld [vmem:[#allocation5 + $0x158] sm:$0xf]
    %v217 = vld [vmem:[#allocation5 + $0x15c] sm:$0xf]
    %v218 = vld [vmem:[#allocation5 + $0x160] sm:$0xf]
    %v219 = vld [vmem:[#allocation5 + $0x164] sm:$0xf]
    %v220 = vld [vmem:[#allocation5 + $0x168] sm:$0xf]
    %v221 = vld [vmem:[#allocation5 + $0x16c] sm:$0xf]
    %v222 = vld [vmem:[#allocation5 + $0x170] sm:$0xf]
    %v223 = vld [vmem:[#allocation5 + $0x174] sm:$0xf]
    %v224 = vld [vmem:[#allocation5 + $0x178] sm:$0xf]
    %v225 = vld [vmem:[#allocation5 + $0x17c] sm:$0xf]
    %v226 = vld [vmem:[#allocation5 + $0x180] sm:$0xf]
    %v227 = vld [vmem:[#allocation5 + $0x184] sm:$0xf]
    %v228 = vld [vmem:[%s6] sm:$0x1]
    %v230 = vlaneseq
    %v231 = vshrl.u32 %v230, 7
    %v232 = vsub.s32 0, %v231
    %v233 = vrot.slane %v228, %v232
    %v243 = vunpack.c.l.b16 %v122
    %v244 = vunpack.c.h.b16 %v122
    %v245 = vunpack.c.l.b16 %v123
    %v246 = vunpack.c.h.b16 %v123
    %v247 = vunpack.c.l.b16 %v124
    %v248 = vunpack.c.h.b16 %v124
    %v249 = vunpack.c.l.b16 %v125
    %v250 = vunpack.c.l.b16 %v126
    %v251 = vunpack.c.h.b16 %v126
    %v252 = vunpack.c.l.b16 %v127
    %v253 = vunpack.c.h.b16 %v127
    %v254 = vunpack.c.l.b16 %v128
    %v255 = vunpack.c.h.b16 %v128
    %v256 = vunpack.c.l.b16 %v129
    %v257 = vpack.c.b16 %v250, %v243
    %v258 = vpack.c.b16 %v251, %v244
    %v259 = vpack.c.b16 %v252, %v245
    %v260 = vpack.c.b16 %v253, %v246
    %v261 = vpack.c.b16 %v254, %v247
    %v262 = vpack.c.b16 %v255, %v248
    %v263 = vpack.c.b16 %v256, %v249
    %v368 = vunpack.c.l.b16 %v130
    %v369 = vunpack.c.l.b16 %v131
    %v370 = vunpack.c.l.b16 %v132
    %v371 = vunpack.c.l.b16 %v133
    %v372 = vunpack.c.l.b16 %v134
    %v373 = vunpack.c.l.b16 %v135
    %v374 = vunpack.c.l.b16 %v136
    %v375 = vunpack.c.l.b16 %v137
    %v376 = vunpack.c.l.b16 %v138
    %v377 = vunpack.c.l.b16 %v139
    %v378 = vunpack.c.l.b16 %v140
    %v379 = vunpack.c.l.b16 %v141
    %v380 = vunpack.c.l.b16 %v142
    %v381 = vunpack.c.l.b16 %v143
    %v382 = vunpack.c.l.b16 %v144
    %v383 = vunpack.c.l.b16 %v145
    %v384 = vunpack.c.l.b16 %v146
    %v385 = vunpack.c.l.b16 %v147
    %v386 = vunpack.c.l.b16 %v148
    %v387 = vunpack.c.l.b16 %v149
    %v388 = vunpack.c.l.b16 %v150
    %v389 = vunpack.c.l.b16 %v151
    %v390 = vunpack.c.l.b16 %v152
    %v391 = vunpack.c.l.b16 %v153
    %v392 = vunpack.c.l.b16 %v154
    %v393 = vunpack.c.l.b16 %v155
    %v394 = vunpack.c.l.b16 %v156
    %v395 = vunpack.c.l.b16 %v157
    %v396 = vunpack.c.l.b16 %v158
    %v397 = vunpack.c.l.b16 %v159
    %v398 = vunpack.c.l.b16 %v160
    %v399 = vunpack.c.l.b16 %v161
    %v400 = vunpack.c.l.b16 %v162
    %v401 = vunpack.c.l.b16 %v163
    %v402 = vunpack.c.l.b16 %v164
    %v403 = vunpack.c.l.b16 %v165
    %v404 = vunpack.c.l.b16 %v166
    %v405 = vunpack.c.l.b16 %v167
    %v406 = vunpack.c.l.b16 %v168
    %v407 = vunpack.c.l.b16 %v169
    %v408 = vunpack.c.l.b16 %v170
    %v409 = vunpack.c.l.b16 %v171
    %v410 = vunpack.c.l.b16 %v172
    %v411 = vunpack.c.l.b16 %v173
    %v412 = vunpack.c.l.b16 %v174
    %v413 = vunpack.c.l.b16 %v175
    %v414 = vunpack.c.l.b16 %v176
    %v415 = vunpack.c.l.b16 %v177
    %v416 = vunpack.c.l.b16 %v178
    %v417 = vunpack.c.l.b16 %v179
    %v418 = vunpack.c.l.b16 %v180
    %v419 = vunpack.c.l.b16 %v181
    %v420 = vunpack.c.l.b16 %v182
    %v421 = vunpack.c.l.b16 %v183
    %v422 = vunpack.c.l.b16 %v184
    %v423 = vunpack.c.l.b16 %v185
    %v424 = vunpack.c.l.b16 %v186
    %v425 = vunpack.c.l.b16 %v187
    %v426 = vunpack.c.l.b16 %v188
    %v427 = vunpack.c.l.b16 %v189
    %v428 = vunpack.c.l.b16 %v190
    %v429 = vunpack.c.l.b16 %v191
    %v430 = vunpack.c.l.b16 %v192
    %v431 = vunpack.c.l.b16 %v193
    %v432 = vunpack.c.l.b16 %v194
    %v433 = vunpack.c.l.b16 %v195
    %v434 = vunpack.c.l.b16 %v196
    %v435 = vunpack.c.l.b16 %v197
    %v436 = vunpack.c.l.b16 %v198
    %v437 = vunpack.c.l.b16 %v199
    %v438 = vunpack.c.l.b16 %v200
    %v439 = vunpack.c.l.b16 %v201
    %v440 = vunpack.c.l.b16 %v202
    %v441 = vunpack.c.l.b16 %v203
    %v442 = vunpack.c.l.b16 %v204
    %v443 = vunpack.c.l.b16 %v205
    %v444 = vunpack.c.l.b16 %v206
    %v445 = vunpack.c.l.b16 %v207
    %v446 = vunpack.c.l.b16 %v208
    %v447 = vunpack.c.l.b16 %v209
    %v448 = vunpack.c.l.b16 %v210
    %v449 = vunpack.c.l.b16 %v211
    %v450 = vunpack.c.l.b16 %v212
    %v451 = vunpack.c.l.b16 %v213
    %v452 = vunpack.c.l.b16 %v214
    %v453 = vunpack.c.l.b16 %v215
    %v454 = vunpack.c.l.b16 %v216
    %v455 = vunpack.c.l.b16 %v217
    %v456 = vunpack.c.l.b16 %v218
    %v457 = vunpack.c.l.b16 %v219
    %v458 = vunpack.c.l.b16 %v220
    %v459 = vunpack.c.l.b16 %v221
    %v460 = vunpack.c.l.b16 %v222
    %v461 = vunpack.c.l.b16 %v223
    %v462 = vunpack.c.l.b16 %v224
    %v463 = vunpack.c.l.b16 %v225
    %v464 = vunpack.c.l.b16 %v226
    %v465 = vunpack.c.l.b16 %v227
    %v466 = vpack.c.b16 %v369, %v368
    %v467 = vpack.c.b16 %v371, %v370
    %v468 = vpack.c.b16 %v373, %v372
    %v469 = vpack.c.b16 %v375, %v374
    %v470 = vpack.c.b16 %v377, %v376
    %v471 = vpack.c.b16 %v379, %v378
    %v472 = vpack.c.b16 %v381, %v380
    %v473 = vpack.c.b16 %v383, %v382
    %v474 = vpack.c.b16 %v385, %v384
    %v475 = vpack.c.b16 %v387, %v386
    %v476 = vpack.c.b16 %v389, %v388
    %v477 = vpack.c.b16 %v391, %v390
    %v478 = vpack.c.b16 %v393, %v392
    %v479 = vpack.c.b16 %v395, %v394
    %v480 = vpack.c.b16 %v397, %v396
    %v481 = vpack.c.b16 %v399, %v398
    %v482 = vpack.c.b16 %v401, %v400
    %v483 = vpack.c.b16 %v403, %v402
    %v484 = vpack.c.b16 %v405, %v404
    %v485 = vpack.c.b16 %v407, %v406
    %v486 = vpack.c.b16 %v409, %v408
    %v487 = vpack.c.b16 %v411, %v410
    %v488 = vpack.c.b16 %v413, %v412
    %v489 = vpack.c.b16 %v415, %v414
    %v490 = vpack.c.b16 %v417, %v416
    %v491 = vpack.c.b16 %v419, %v418
    %v492 = vpack.c.b16 %v421, %v420
    %v493 = vpack.c.b16 %v423, %v422
    %v494 = vpack.c.b16 %v425, %v424
    %v495 = vpack.c.b16 %v427, %v426
    %v496 = vpack.c.b16 %v429, %v428
    %v497 = vpack.c.b16 %v431, %v430
    %v498 = vpack.c.b16 %v433, %v432
    %v499 = vpack.c.b16 %v435, %v434
    %v500 = vpack.c.b16 %v437, %v436
    %v501 = vpack.c.b16 %v439, %v438
    %v502 = vpack.c.b16 %v441, %v440
    %v503 = vpack.c.b16 %v443, %v442
    %v504 = vpack.c.b16 %v445, %v444
    %v505 = vpack.c.b16 %v447, %v446
    %v506 = vpack.c.b16 %v449, %v448
    %v507 = vpack.c.b16 %v451, %v450
    %v508 = vpack.c.b16 %v453, %v452
    %v509 = vpack.c.b16 %v455, %v454
    %v510 = vpack.c.b16 %v457, %v456
    %v511 = vpack.c.b16 %v459, %v458
    %v512 = vpack.c.b16 %v461, %v460
    %v513 = vpack.c.b16 %v463, %v462
    %v514 = vpack.c.b16 %v465, %v464
    %vm564 = vcmask 130048
    %v566 = vsel %vm564, %v263, 0
    %568 = vmatprep.subr.bf16.mxu0 0
    %569 = vmatpush1.bf16.msra.mxu0 %v466
    %570 = vmatprep.subr.bf16.mxu0 0
    %571 = vmatpush1.bf16.msra.mxu0 %v467
    %572 = vmatprep.subr.bf16.mxu0 0
    %573 = vmatpush1.bf16.msra.mxu0 %v468
    %574 = vmatprep.subr.bf16.mxu0 0
    %575 = vmatpush1.bf16.msra.mxu0 %v469
    %576 = vmatprep.subr.bf16.mxu0 0
    %577 = vmatpush1.bf16.msra.mxu0 %v470
    %578 = vmatprep.subr.bf16.mxu0 0
    %579 = vmatpush1.bf16.msra.mxu0 %v471
    %580 = vmatprep.subr.bf16.mxu0 0
    %581 = vmatpush1.bf16.msra.mxu0 %v472
    %582 = vmatprep.subr.bf16.mxu0 0
    %583 = vmatpush1.bf16.msra.mxu0 %v473
    %584 = vmatprep.subr.bf16.mxu0 0
    %585 = vmatpush1.bf16.msra.mxu0 %v474
    %586 = vmatprep.subr.bf16.mxu0 0
    %587 = vmatpush1.bf16.msra.mxu0 %v475
    %588 = vmatprep.subr.bf16.mxu0 0
    %589 = vmatpush1.bf16.msra.mxu0 %v476
    %590 = vmatprep.subr.bf16.mxu0 0
    %591 = vmatpush1.bf16.msra.mxu0 %v477
    %592 = vmatprep.subr.bf16.mxu0 0
    %593 = vmatpush1.bf16.msra.mxu0 %v478
    %594 = vmatprep.subr.bf16.mxu0 0
    %595 = vmatpush1.bf16.msra.mxu0 %v479
    %596 = vmatprep.subr.bf16.mxu0 0
    %597 = vmatpush1.bf16.msra.mxu0 %v480
    %598 = vmatprep.subr.bf16.mxu0 0
    %599 = vmatpush1.bf16.msra.mxu0 %v481
    %600 = vmatprep.mubr.bf16.mxu0 %v258
    %601 = vmatmul.mubr.bf16.gmra.mrb[0].mxu0 %v257
    %v602 = vpop.f32.mrb[0].mxu0
    %v603 = vadd.f32 %v233, %v602
    %v604 = vpop.f32.mrb[0].mxu0
    %v605 = vpop.f32.mrb[0].mxu0
    %v606 = vadd.f32 %v233, %v605
    %v607 = vpop.f32.mrb[0].mxu0
    %608 = vdwg.mxu0
    %609 = vmatprep.subr.bf16.mxu0 0
    %610 = vmatpush1.bf16.msra.mxu0 %v482
    %611 = vmatprep.subr.bf16.mxu0 0
    %612 = vmatpush1.bf16.msra.mxu0 %v483
    %613 = vmatprep.subr.bf16.mxu0 0
    %614 = vmatpush1.bf16.msra.mxu0 %v484
    %615 = vmatprep.subr.bf16.mxu0 0
    %616 = vmatpush1.bf16.msra.mxu0 %v485
    %617 = vmatprep.subr.bf16.mxu0 0
    %618 = vmatpush1.bf16.msra.mxu0 %v486
    %619 = vmatprep.subr.bf16.mxu0 0
    %620 = vmatpush1.bf16.msra.mxu0 %v487
    %621 = vmatprep.subr.bf16.mxu0 0
    %622 = vmatpush1.bf16.msra.mxu0 %v488
    %623 = vmatprep.subr.bf16.mxu0 0
    %624 = vmatpush1.bf16.msra.mxu0 %v489
    %625 = vmatprep.subr.bf16.mxu0 0
    %626 = vmatpush1.bf16.msra.mxu0 %v490
    %627 = vmatprep.subr.bf16.mxu0 0
    %628 = vmatpush1.bf16.msra.mxu0 %v491
    %629 = vmatprep.subr.bf16.mxu0 0
    %630 = vmatpush1.bf16.msra.mxu0 %v492
    %631 = vmatprep.subr.bf16.mxu0 0
    %632 = vmatpush1.bf16.msra.mxu0 %v493
    %633 = vmatprep.subr.bf16.mxu0 0
    %634 = vmatpush1.bf16.msra.mxu0 %v494
    %635 = vmatprep.subr.bf16.mxu0 0
    %636 = vmatpush1.bf16.msra.mxu0 %v495
    %637 = vmatprep.subr.bf16.mxu0 0
    %638 = vmatpush1.bf16.msra.mxu0 %v496
    %639 = vmatprep.subr.bf16.mxu0 0
    %640 = vmatpush1.bf16.msra.mxu0 %v497
    %641 = vmatprep.mubr.bf16.mxu0 %v260
    %642 = vmatmul.mubr.bf16.gmra.mrb[0].mxu0 %v259
    %v643 = vpop.f32.mrb[0].mxu0
    %v644 = vadd.f32 %v603, %v643
    %v645 = vpop.f32.mrb[0].mxu0
    %v646 = vpop.f32.mrb[0].mxu0
    %v647 = vadd.f32 %v606, %v646
    %v648 = vpop.f32.mrb[0].mxu0
    %649 = vdwg.mxu0
    %650 = vmatprep.subr.bf16.mxu0 0
    %651 = vmatpush1.bf16.msra.mxu0 %v498
    %652 = vmatprep.subr.bf16.mxu0 0
    %653 = vmatpush1.bf16.msra.mxu0 %v499
    %654 = vmatprep.subr.bf16.mxu0 0
    %655 = vmatpush1.bf16.msra.mxu0 %v500
    %656 = vmatprep.subr.bf16.mxu0 0
    %657 = vmatpush1.bf16.msra.mxu0 %v501
    %658 = vmatprep.subr.bf16.mxu0 0
    %659 = vmatpush1.bf16.msra.mxu0 %v502
    %660 = vmatprep.subr.bf16.mxu0 0
    %661 = vmatpush1.bf16.msra.mxu0 %v503
    %662 = vmatprep.subr.bf16.mxu0 0
    %663 = vmatpush1.bf16.msra.mxu0 %v504
    %664 = vmatprep.subr.bf16.mxu0 0
    %665 = vmatpush1.bf16.msra.mxu0 %v505
    %666 = vmatprep.subr.bf16.mxu0 0
    %667 = vmatpush1.bf16.msra.mxu0 %v506
    %668 = vmatprep.subr.bf16.mxu0 0
    %669 = vmatpush1.bf16.msra.mxu0 %v507
    %670 = vmatprep.subr.bf16.mxu0 0
    %671 = vmatpush1.bf16.msra.mxu0 %v508
    %672 = vmatprep.subr.bf16.mxu0 0
    %673 = vmatpush1.bf16.msra.mxu0 %v509
    %674 = vmatprep.subr.bf16.mxu0 0
    %675 = vmatpush1.bf16.msra.mxu0 %v510
    %676 = vmatprep.subr.bf16.mxu0 0
    %677 = vmatpush1.bf16.msra.mxu0 %v511
    %678 = vmatprep.subr.bf16.mxu0 0
    %679 = vmatpush1.bf16.msra.mxu0 %v512
    %680 = vmatprep.subr.bf16.mxu0 0
    %681 = vmatpush1.bf16.msra.mxu0 %v513
    %682 = vmatprep.mubr.bf16.mxu0 %v262
    %683 = vmatmul.mubr.bf16.gmra.mrb[0].mxu0 %v261
    %v684 = vpop.f32.mrb[0].mxu0
    %v685 = vadd.f32 %v644, %v684
    %v686 = vpop.f32.mrb[0].mxu0
    %v687 = vpop.f32.mrb[0].mxu0
    %v688 = vadd.f32 %v647, %v687
    %v689 = vpop.f32.mrb[0].mxu0
    %690 = vdwg.mxu0
    %691 = vmatprep.subr.bf16.mxu0 0
    %692 = vmatpush1.bf16.msra.mxu0 %v514
    %693 = vmatprep.subr.bf16.mxu0 0
    %694 = vmatpush1.bf16.msra.mxu0 0
    %695 = vmatprep.subr.bf16.mxu0 0
    %696 = vmatpush1.bf16.msra.mxu0 0
    %697 = vmatprep.subr.bf16.mxu0 0
    %698 = vmatpush1.bf16.msra.mxu0 0
    %699 = vmatprep.subr.bf16.mxu0 0
    %700 = vmatpush1.bf16.msra.mxu0 0
    %701 = vmatprep.subr.bf16.mxu0 0
    %702 = vmatpush1.bf16.msra.mxu0 0
    %703 = vmatprep.subr.bf16.mxu0 0
    %704 = vmatpush1.bf16.msra.mxu0 0
    %705 = vmatprep.subr.bf16.mxu0 0
    %706 = vmatpush1.bf16.msra.mxu0 0
    %707 = vmatprep.subr.bf16.mxu0 0
    %708 = vmatpush1.bf16.msra.mxu0 0
    %709 = vmatprep.subr.bf16.mxu0 0
    %710 = vmatpush1.bf16.msra.mxu0 0
    %711 = vmatprep.subr.bf16.mxu0 0
    %712 = vmatpush1.bf16.msra.mxu0 0
    %713 = vmatprep.subr.bf16.mxu0 0
    %714 = vmatpush1.bf16.msra.mxu0 0
    %715 = vmatprep.subr.bf16.mxu0 0
    %716 = vmatpush1.bf16.msra.mxu0 0
    %717 = vmatprep.subr.bf16.mxu0 0
    %718 = vmatpush1.bf16.msra.mxu0 0
    %719 = vmatprep.subr.bf16.mxu0 0
    %720 = vmatpush1.bf16.msra.mxu0 0
    %721 = vmatprep.subr.bf16.mxu0 0
    %722 = vmatpush1.bf16.msra.mxu0 0
    %723 = vmatprep.mubr.bf16.mxu0 0
    %724 = vmatmul.mubr.bf16.gmra.mrb[0].mxu0 %v566
    %v725 = vpop.f32.mrb[0].mxu0
    %v726 = vadd.f32 %v685, %v725
    %v727 = vpop.f32.mrb[0].mxu0
    %v728 = vpop.f32.mrb[0].mxu0
    %v729 = vadd.f32 %v688, %v728
    %v730 = vpop.f32.mrb[0].mxu0
    %731 = vdwg.mxu0
    %v732 = vmax.f32 %v726, 0.0
    %v733 = vmax.f32 %v729, 0.0
    %v734 = vpack.c.bf16 %v733, %v732
    %v735 = vld [vmem:[#allocation7] sm:$0xf]
    %v736 = vld [vmem:[#allocation7 + $0x4] sm:$0xf]
    %v737 = vld [vmem:[#allocation7 + $0x8] sm:$0xf]
    %v738 = vld [vmem:[#allocation7 + $0xc] sm:$0xf]
    %v739 = vld [vmem:[#allocation7 + $0x10] sm:$0xf]
    %v740 = vld [vmem:[#allocation7 + $0x14] sm:$0xf]
    %v741 = vld [vmem:[#allocation7 + $0x18] sm:$0xf]
    %v742 = vld [vmem:[#allocation7 + $0x1c] sm:$0xf]
    %v743 = vld [vmem:[#allocation7 + $0x20] sm:$0xf]
    %v744 = vld [vmem:[#allocation7 + $0x24] sm:$0xf]
    %v745 = vld [vmem:[#allocation7 + $0x28] sm:$0xf]
    %v746 = vld [vmem:[#allocation7 + $0x2c] sm:$0xf]
    %v747 = vld [vmem:[#allocation7 + $0x30] sm:$0xf]
    %v748 = vld [vmem:[#allocation7 + $0x34] sm:$0xf]
    %v749 = vld [vmem:[#allocation7 + $0x38] sm:$0xf]
    %v750 = vld [vmem:[#allocation7 + $0x3c] sm:$0xf]
    %v751 = vld [vmem:[%s7] sm:$0x1]
    %v753 = vlaneseq
    %v754 = vshrl.u32 %v753, 7
    %v755 = vsub.s32 0, %v754
    %v756 = vrot.slane %v751, %v755
    %v774 = vunpack.c.l.b16 %v735
    %v775 = vunpack.c.l.b16 %v736
    %v776 = vunpack.c.l.b16 %v737
    %v777 = vunpack.c.l.b16 %v738
    %v778 = vunpack.c.l.b16 %v739
    %v779 = vunpack.c.l.b16 %v740
    %v780 = vunpack.c.l.b16 %v741
    %v781 = vunpack.c.l.b16 %v742
    %v782 = vunpack.c.l.b16 %v743
    %v783 = vunpack.c.l.b16 %v744
    %v784 = vunpack.c.l.b16 %v745
    %v785 = vunpack.c.l.b16 %v746
    %v786 = vunpack.c.l.b16 %v747
    %v787 = vunpack.c.l.b16 %v748
    %v788 = vunpack.c.l.b16 %v749
    %v789 = vunpack.c.l.b16 %v750
    %v790 = vpack.c.b16 %v775, %v774
    %v791 = vpack.c.b16 %v777, %v776
    %v792 = vpack.c.b16 %v779, %v778
    %v793 = vpack.c.b16 %v781, %v780
    %v794 = vpack.c.b16 %v783, %v782
    %v795 = vpack.c.b16 %v785, %v784
    %v796 = vpack.c.b16 %v787, %v786
    %v797 = vpack.c.b16 %v789, %v788
    %806 = vmatprep.subr.bf16.mxu0 0
    %807 = vmatpush1.bf16.msra.mxu0 %v790
    %808 = vmatprep.subr.bf16.mxu0 0
    %809 = vmatpush1.bf16.msra.mxu0 %v791
    %810 = vmatprep.subr.bf16.mxu0 0
    %811 = vmatpush1.bf16.msra.mxu0 %v792
    %812 = vmatprep.subr.bf16.mxu0 0
    %813 = vmatpush1.bf16.msra.mxu0 %v793
    %814 = vmatprep.subr.bf16.mxu0 0
    %815 = vmatpush1.bf16.msra.mxu0 %v794
    %816 = vmatprep.subr.bf16.mxu0 0
    %817 = vmatpush1.bf16.msra.mxu0 %v795
    %818 = vmatprep.subr.bf16.mxu0 0
    %819 = vmatpush1.bf16.msra.mxu0 %v796
    %820 = vmatprep.subr.bf16.mxu0 0
    %821 = vmatpush1.bf16.msra.mxu0 %v797
    %822 = vmatprep.subr.bf16.mxu0 0
    %823 = vmatpush1.bf16.msra.mxu0 0
    %824 = vmatprep.subr.bf16.mxu0 0
    %825 = vmatpush1.bf16.msra.mxu0 0
    %826 = vmatprep.subr.bf16.mxu0 0
    %827 = vmatpush1.bf16.msra.mxu0 0
    %828 = vmatprep.subr.bf16.mxu0 0
    %829 = vmatpush1.bf16.msra.mxu0 0
    %830 = vmatprep.subr.bf16.mxu0 0
    %831 = vmatpush1.bf16.msra.mxu0 0
    %832 = vmatprep.subr.bf16.mxu0 0
    %833 = vmatpush1.bf16.msra.mxu0 0
    %834 = vmatprep.subr.bf16.mxu0 0
    %835 = vmatpush1.bf16.msra.mxu0 0
    %836 = vmatprep.subr.bf16.mxu0 0
    %837 = vmatpush1.bf16.msra.mxu0 0
    %838 = vmatprep.mubr.bf16.mxu0 0
    %839 = vmatmul.mubr.bf16.gmra.mrb[0].mxu0 %v734
    %v840 = vpop.f32.mrb[0].mxu0
    %v841 = vadd.f32 %v756, %v840
    %v842 = vpop.f32.mrb[0].mxu0
    %v843 = vpop.f32.mrb[0].mxu0
    %v844 = vadd.f32 %v756, %v843
    %v845 = vpop.f32.mrb[0].mxu0
    %846 = vdwg.mxu0
    %v847 = vmax.f32 %v841, 0.0
    %v848 = vmax.f32 %v844, 0.0
    %v849 = vpack.c.bf16 %v848, %v847
    %v850 = vld [vmem:[#allocation8] sm:$0xf]
    %v851 = vld [vmem:[#allocation8 + $0x4] sm:$0xf]
    %v852 = vld [vmem:[#allocation8 + $0x8] sm:$0xf]
    %v853 = vld [vmem:[#allocation8 + $0xc] sm:$0xf]
    %v854 = vld [vmem:[#allocation8 + $0x10] sm:$0xf]
    %v855 = vld [vmem:[#allocation8 + $0x14] sm:$0xf]
    %v856 = vld [vmem:[#allocation8 + $0x18] sm:$0xf]
    %v857 = vld [vmem:[#allocation8 + $0x1c] sm:$0xf]
    %v858 = vld [vmem:[#allocation8 + $0x20] sm:$0xf]
    %v859 = vld [vmem:[#allocation8 + $0x24] sm:$0xf]
    %v860 = vld [vmem:[#allocation8 + $0x28] sm:$0xf]
    %v861 = vld [vmem:[#allocation8 + $0x2c] sm:$0xf]
    %v862 = vld [vmem:[#allocation8 + $0x30] sm:$0xf]
    %v863 = vld [vmem:[#allocation8 + $0x34] sm:$0xf]
    %v864 = vld [vmem:[#allocation8 + $0x38] sm:$0xf]
    %v865 = vld [vmem:[#allocation8 + $0x3c] sm:$0xf]
    %v866 = vld [vmem:[%s8] sm:$0x1]
    %v868 = vlaneseq
    %v869 = vshrl.u32 %v868, 7
    %v870 = vsub.s32 0, %v869
    %v871 = vrot.slane %v866, %v870
    %v889 = vunpack.c.l.b16 %v850
    %v890 = vunpack.c.l.b16 %v851
    %v891 = vunpack.c.l.b16 %v852
    %v892 = vunpack.c.l.b16 %v853
    %v893 = vunpack.c.l.b16 %v854
    %v894 = vunpack.c.l.b16 %v855
    %v895 = vunpack.c.l.b16 %v856
    %v896 = vunpack.c.l.b16 %v857
    %v897 = vunpack.c.l.b16 %v858
    %v898 = vunpack.c.l.b16 %v859
    %v899 = vunpack.c.l.b16 %v860
    %v900 = vunpack.c.l.b16 %v861
    %v901 = vunpack.c.l.b16 %v862
    %v902 = vunpack.c.l.b16 %v863
    %v903 = vunpack.c.l.b16 %v864
    %v904 = vunpack.c.l.b16 %v865
    %v905 = vpack.c.b16 %v890, %v889
    %v906 = vpack.c.b16 %v892, %v891
    %v907 = vpack.c.b16 %v894, %v893
    %v908 = vpack.c.b16 %v896, %v895
    %v909 = vpack.c.b16 %v898, %v897
    %v910 = vpack.c.b16 %v900, %v899
    %v911 = vpack.c.b16 %v902, %v901
    %v912 = vpack.c.b16 %v904, %v903
    %921 = vmatprep.subr.bf16.mxu0 0
    %922 = vmatpush1.bf16.msra.mxu0 %v905
    %923 = vmatprep.subr.bf16.mxu0 0
    %924 = vmatpush1.bf16.msra.mxu0 %v906
    %925 = vmatprep.subr.bf16.mxu0 0
    %926 = vmatpush1.bf16.msra.mxu0 %v907
    %927 = vmatprep.subr.bf16.mxu0 0
    %928 = vmatpush1.bf16.msra.mxu0 %v908
    %929 = vmatprep.subr.bf16.mxu0 0
    %930 = vmatpush1.bf16.msra.mxu0 %v909
    %931 = vmatprep.subr.bf16.mxu0 0
    %932 = vmatpush1.bf16.msra.mxu0 %v910
    %933 = vmatprep.subr.bf16.mxu0 0
    %934 = vmatpush1.bf16.msra.mxu0 %v911
    %935 = vmatprep.subr.bf16.mxu0 0
    %936 = vmatpush1.bf16.msra.mxu0 %v912
    %937 = vmatprep.subr.bf16.mxu0 0
    %938 = vmatpush1.bf16.msra.mxu0 0
    %939 = vmatprep.subr.bf16.mxu0 0
    %940 = vmatpush1.bf16.msra.mxu0 0
    %941 = vmatprep.subr.bf16.mxu0 0
    %942 = vmatpush1.bf16.msra.mxu0 0
    %943 = vmatprep.subr.bf16.mxu0 0
    %944 = vmatpush1.bf16.msra.mxu0 0
    %945 = vmatprep.subr.bf16.mxu0 0
    %946 = vmatpush1.bf16.msra.mxu0 0
    %947 = vmatprep.subr.bf16.mxu0 0
    %948 = vmatpush1.bf16.msra.mxu0 0
    %949 = vmatprep.subr.bf16.mxu0 0
    %950 = vmatpush1.bf16.msra.mxu0 0
    %951 = vmatprep.subr.bf16.mxu0 0
    %952 = vmatpush1.bf16.msra.mxu0 0
    %953 = vmatprep.mubr.bf16.mxu0 0
    %954 = vmatmul.mubr.bf16.gmra.mrb[0].mxu0 %v849
    %v955 = vpop.f32.mrb[0].mxu0
    %v956 = vadd.f32 %v871, %v955
    %v957 = vpop.f32.mrb[0].mxu0
    %v958 = vpop.f32.mrb[0].mxu0
    %v959 = vadd.f32 %v871, %v958
    %v960 = vpop.f32.mrb[0].mxu0
    %961 = vdwg.mxu0
    %v962 = vmax.f32 %v956, 0.0
    %v963 = vmax.f32 %v959, 0.0
    %v964 = vpack.c.bf16 %v963, %v962
    %v965 = vld [vmem:[#allocation10] sm:$0xf]
    %v966 = vld [vmem:[#allocation10 + $0x4] sm:$0xf]
    %v967 = vld [vmem:[#allocation10 + $0x8] sm:$0xf]
    %v968 = vld [vmem:[#allocation10 + $0xc] sm:$0xf]
    %v969 = vld [vmem:[#allocation10 + $0x10] sm:$0xf]
    %v970 = vld [vmem:[#allocation10 + $0x14] sm:$0xf]
    %v971 = vld [vmem:[#allocation10 + $0x18] sm:$0xf]
    %v972 = vld [vmem:[#allocation10 + $0x1c] sm:$0xf]
    %v973 = vld [vmem:[#allocation10 + $0x20] sm:$0xf]
    %v974 = vld [vmem:[#allocation10 + $0x24] sm:$0xf]
    %v975 = vld [vmem:[#allocation10 + $0x28] sm:$0xf]
    %v976 = vld [vmem:[#allocation10 + $0x2c] sm:$0xf]
    %v977 = vld [vmem:[#allocation10 + $0x30] sm:$0xf]
    %v978 = vld [vmem:[#allocation10 + $0x34] sm:$0xf]
    %v979 = vld [vmem:[#allocation10 + $0x38] sm:$0xf]
    %v980 = vld [vmem:[#allocation10 + $0x3c] sm:$0xf]
    %v981 = vld [vmem:[%s9] sm:$0x1]
    %v983 = vlaneseq
    %v984 = vshrl.u32 %v983, 7
    %v985 = vsub.s32 0, %v984
    %v986 = vrot.slane %v981, %v985
    %v1004 = vunpack.c.l.b16 %v965
    %v1005 = vunpack.c.l.b16 %v966
    %v1006 = vunpack.c.l.b16 %v967
    %v1007 = vunpack.c.l.b16 %v968
    %v1008 = vunpack.c.l.b16 %v969
    %v1009 = vunpack.c.l.b16 %v970
    %v1010 = vunpack.c.l.b16 %v971
    %v1011 = vunpack.c.l.b16 %v972
    %v1012 = vunpack.c.l.b16 %v973
    %v1013 = vunpack.c.l.b16 %v974
    %v1014 = vunpack.c.l.b16 %v975
    %v1015 = vunpack.c.l.b16 %v976
    %v1016 = vunpack.c.l.b16 %v977
    %v1017 = vunpack.c.l.b16 %v978
    %v1018 = vunpack.c.l.b16 %v979
    %v1019 = vunpack.c.l.b16 %v980
    %v1020 = vpack.c.b16 %v1005, %v1004
    %v1021 = vpack.c.b16 %v1007, %v1006
    %v1022 = vpack.c.b16 %v1009, %v1008
    %v1023 = vpack.c.b16 %v1011, %v1010
    %v1024 = vpack.c.b16 %v1013, %v1012
    %v1025 = vpack.c.b16 %v1015, %v1014
    %v1026 = vpack.c.b16 %v1017, %v1016
    %v1027 = vpack.c.b16 %v1019, %v1018
    %1036 = vmatprep.subr.bf16.mxu0 0
    %1037 = vmatpush1.bf16.msra.mxu0 %v1020
    %1038 = vmatprep.subr.bf16.mxu0 0
    %1039 = vmatpush1.bf16.msra.mxu0 %v1021
    %1040 = vmatprep.subr.bf16.mxu0 0
    %1041 = vmatpush1.bf16.msra.mxu0 %v1022
    %1042 = vmatprep.subr.bf16.mxu0 0
    %1043 = vmatpush1.bf16.msra.mxu0 %v1023
    %1044 = vmatprep.subr.bf16.mxu0 0
    %1045 = vmatpush1.bf16.msra.mxu0 %v1024
    %1046 = vmatprep.subr.bf16.mxu0 0
    %1047 = vmatpush1.bf16.msra.mxu0 %v1025
    %1048 = vmatprep.subr.bf16.mxu0 0
    %1049 = vmatpush1.bf16.msra.mxu0 %v1026
    %1050 = vmatprep.subr.bf16.mxu0 0
    %1051 = vmatpush1.bf16.msra.mxu0 %v1027
    %1052 = vmatprep.subr.bf16.mxu0 0
    %1053 = vmatpush1.bf16.msra.mxu0 0
    %1054 = vmatprep.subr.bf16.mxu0 0
    %1055 = vmatpush1.bf16.msra.mxu0 0
    %1056 = vmatprep.subr.bf16.mxu0 0
    %1057 = vmatpush1.bf16.msra.mxu0 0
    %1058 = vmatprep.subr.bf16.mxu0 0
    %1059 = vmatpush1.bf16.msra.mxu0 0
    %1060 = vmatprep.subr.bf16.mxu0 0
    %1061 = vmatpush1.bf16.msra.mxu0 0
    %1062 = vmatprep.subr.bf16.mxu0 0
    %1063 = vmatpush1.bf16.msra.mxu0 0
    %1064 = vmatprep.subr.bf16.mxu0 0
    %1065 = vmatpush1.bf16.msra.mxu0 0
    %1066 = vmatprep.subr.bf16.mxu0 0
    %1067 = vmatpush1.bf16.msra.mxu0 0
    %1068 = vmatprep.mubr.bf16.mxu0 0
    %1069 = vmatmul.mubr.bf16.gmra.mrb[0].mxu0 %v964
    %v1070 = vpop.f32.mrb[0].mxu0
    %v1071 = vadd.f32 %v986, %v1070
    %v1072 = vpop.f32.mrb[0].mxu0
    %v1073 = vpop.f32.mrb[0].mxu0
    %v1074 = vadd.f32 %v986, %v1073
    %v1075 = vpop.f32.mrb[0].mxu0
    %1076 = vdwg.mxu0
    %v1077 = vmax.f32 %v1071, 0.0
    %v1078 = vmax.f32 %v1074, 0.0
    %v1079 = vpack.c.bf16 %v1078, %v1077
    %v1080 = vld [vmem:[#allocation11] sm:$0xf]
    %v1081 = vld [vmem:[#allocation11 + $0x4] sm:$0xf]
    %v1082 = vld [vmem:[#allocation11 + $0x8] sm:$0xf]
    %v1083 = vld [vmem:[#allocation11 + $0xc] sm:$0xf]
    %v1084 = vld [vmem:[#allocation11 + $0x10] sm:$0xf]
    %v1085 = vld [vmem:[#allocation11 + $0x14] sm:$0xf]
    %v1086 = vld [vmem:[#allocation11 + $0x18] sm:$0xf]
    %v1087 = vld [vmem:[#allocation11 + $0x1c] sm:$0xf]
    %v1088 = vld [vmem:[#allocation11 + $0x20] sm:$0xf]
    %v1089 = vld [vmem:[#allocation11 + $0x24] sm:$0xf]
    %v1090 = vld [vmem:[#allocation11 + $0x28] sm:$0xf]
    %v1091 = vld [vmem:[#allocation11 + $0x2c] sm:$0xf]
    %v1092 = vld [vmem:[#allocation11 + $0x30] sm:$0xf]
    %v1093 = vld [vmem:[#allocation11 + $0x34] sm:$0xf]
    %v1094 = vld [vmem:[#allocation11 + $0x38] sm:$0xf]
    %v1095 = vld [vmem:[#allocation11 + $0x3c] sm:$0xf]
    %v1096 = vld [vmem:[%s10] sm:$0x1]
    %v1098 = vlaneseq
    %v1099 = vshrl.u32 %v1098, 7
    %v1100 = vsub.s32 0, %v1099
    %v1101 = vrot.slane %v1096, %v1100
    %v1119 = vunpack.c.l.b16 %v1080
    %v1120 = vunpack.c.l.b16 %v1081
    %v1121 = vunpack.c.l.b16 %v1082
    %v1122 = vunpack.c.l.b16 %v1083
    %v1123 = vunpack.c.l.b16 %v1084
    %v1124 = vunpack.c.l.b16 %v1085
    %v1125 = vunpack.c.l.b16 %v1086
    %v1126 = vunpack.c.l.b16 %v1087
    %v1127 = vunpack.c.l.b16 %v1088
    %v1128 = vunpack.c.l.b16 %v1089
    %v1129 = vunpack.c.l.b16 %v1090
    %v1130 = vunpack.c.l.b16 %v1091
    %v1131 = vunpack.c.l.b16 %v1092
    %v1132 = vunpack.c.l.b16 %v1093
    %v1133 = vunpack.c.l.b16 %v1094
    %v1134 = vunpack.c.l.b16 %v1095
    %v1135 = vpack.c.b16 %v1120, %v1119
    %v1136 = vpack.c.b16 %v1122, %v1121
    %v1137 = vpack.c.b16 %v1124, %v1123
    %v1138 = vpack.c.b16 %v1126, %v1125
    %v1139 = vpack.c.b16 %v1128, %v1127
    %v1140 = vpack.c.b16 %v1130, %v1129
    %v1141 = vpack.c.b16 %v1132, %v1131
    %v1142 = vpack.c.b16 %v1134, %v1133
    %1151 = vmatprep.subr.bf16.mxu0 0
    %1152 = vmatpush1.bf16.msra.mxu0 %v1135
    %1153 = vmatprep.subr.bf16.mxu0 0
    %1154 = vmatpush1.bf16.msra.mxu0 %v1136
    %1155 = vmatprep.subr.bf16.mxu0 0
    %1156 = vmatpush1.bf16.msra.mxu0 %v1137
    %1157 = vmatprep.subr.bf16.mxu0 0
    %1158 = vmatpush1.bf16.msra.mxu0 %v1138
    %1159 = vmatprep.subr.bf16.mxu0 0
    %1160 = vmatpush1.bf16.msra.mxu0 %v1139
    %1161 = vmatprep.subr.bf16.mxu0 0
    %1162 = vmatpush1.bf16.msra.mxu0 %v1140
    %1163 = vmatprep.subr.bf16.mxu0 0
    %1164 = vmatpush1.bf16.msra.mxu0 %v1141
    %1165 = vmatprep.subr.bf16.mxu0 0
    %1166 = vmatpush1.bf16.msra.mxu0 %v1142
    %1167 = vmatprep.subr.bf16.mxu0 0
    %1168 = vmatpush1.bf16.msra.mxu0 0
    %1169 = vmatprep.subr.bf16.mxu0 0
    %1170 = vmatpush1.bf16.msra.mxu0 0
    %1171 = vmatprep.subr.bf16.mxu0 0
    %1172 = vmatpush1.bf16.msra.mxu0 0
    %1173 = vmatprep.subr.bf16.mxu0 0
    %1174 = vmatpush1.bf16.msra.mxu0 0
    %1175 = vmatprep.subr.bf16.mxu0 0
    %1176 = vmatpush1.bf16.msra.mxu0 0
    %1177 = vmatprep.subr.bf16.mxu0 0
    %1178 = vmatpush1.bf16.msra.mxu0 0
    %1179 = vmatprep.subr.bf16.mxu0 0
    %1180 = vmatpush1.bf16.msra.mxu0 0
    %1181 = vmatprep.subr.bf16.mxu0 0
    %1182 = vmatpush1.bf16.msra.mxu0 0
    %1183 = vmatprep.mubr.bf16.mxu0 0
    %1184 = vmatmul.mubr.bf16.gmra.mrb[0].mxu0 %v1079
    %v1185 = vpop.f32.mrb[0].mxu0
    %v1186 = vadd.f32 %v1101, %v1185
    %v1187 = vpop.f32.mrb[0].mxu0
    %v1188 = vpop.f32.mrb[0].mxu0
    %v1189 = vadd.f32 %v1101, %v1188
    %v1190 = vpop.f32.mrb[0].mxu0
    %1191 = vdwg.mxu0
    %1192 = vst [vmem:[#allocation13] sm:$0xff] %v1186
    %1193 = vst [vmem:[#allocation13 + $0x8] sm:$0xff] %v1189
    // Predicated region
    $region70: #{tpu_custom_call.1} parent=1 // pred_check
      _
    $region71: #{tpu_custom_call.1} parent=1 // pred_check_branch
      %1195 = sbr.rel (0) target = $region73
    $region72: #{tpu_custom_call.1} parent=1 // pred_region
      %s1197 = ssub.s32 256, 256
      %1198 = vsyncadd [#allocation4], %s1197
      %s1199 = sshll.u32 [#allocation13], 4
      %s1200 = int_to_ptr.vmem [resolvable:$true] %s1199
      %1205 = dma.vmem_to_hbm [thread:$0]  %s1200, 256, %s11, [#allocation4], 128, 128, 8
    $region73: #{tpu_custom_call.1} parent=1 // pred_fallthru
      _
    // Predicated region
    $region74: #{tpu_custom_call.1} parent=1 // pred_check
      _
    $region75: #{tpu_custom_call.1} parent=1 // pred_check_branch
      %1207 = sbr.rel (0) target = $region77
    $region76: #{tpu_custom_call.1} parent=1 // pred_region
      %1208 = dma.done [#allocation4], 256
    $region77: #{tpu_custom_call.1} parent=1 // pred_fallthru
      _
    %1209 = vsyncpa [#allocation3], 1
    %1210 = vsyncpa [#allocation6], 1
    %1211 = vsyncpa [#allocation9], 1
    %1212 = vsyncpa [#allocation12], 1
    %1213 = vsyncpa [#allocation4], 1

</llo_original>
